<compile_context>
chip_gen: v7x
topology: tpu7x:2x2x1
jax: 0.10.0
libtpu: 0.0.40
codegen_flags: <defaults>
</compile_context>

<pallas_src>
import numpy as np

import jax
import jax.numpy as jnp
from jax.experimental import pallas as pl
from jax.experimental.pallas import tpu as pltpu


# --------------------------------------------------------------------------- #
# Helpers
# --------------------------------------------------------------------------- #
def _sublane_multiple(dtype) -> int:
    """Native sublane tile for the dtype (8 f32, 16 bf16, 32 int8/fp8)."""
    return max(8, 32 // jnp.dtype(dtype).itemsize)


def _fold_factor(M: int, C: int) -> int:
    """Largest k <= ceil(128/C) dividing M (lane-dense folding, no padding)."""
    if C >= 128:
        return 1
    k = -(-128 // C)
    while M % k:
        k -= 1
    return k


def _pick_tm(rows: int, W: int, sub: int, budget_bytes: int, tile_rows) -> int:
    """Rows per block: ~budget_bytes of f32 per buffer, rounded to sublane tile."""
    cap = max(sub, ((budget_bytes // (W * 4)) // sub) * sub)
    tm = cap if tile_rows is None else max(1, min(int(tile_rows), cap))
    tm = max(sub, (tm // sub) * sub)
    if tm >= rows:
        return rows  # single full-extent block (full-dim exemption)
    return tm


def _combine_k(v, k: int, C: int):
    """(1, k*C) -> (1, C): sum the k lane-folded replicas of each channel."""
    out = v[:, 0:C]
    for r in range(1, k):
        out = out + v[:, r * C:(r + 1) * C]
    return out


def _tile_k(v, k: int):
    """(1, C) -> (1, k*C): replicate per-channel values across the lane fold."""
    return jnp.concatenate([v] * k, axis=1) if k > 1 else v


# --------------------------------------------------------------------------- #
# Kernels
# --------------------------------------------------------------------------- #
def _make_fused_kernel(m_true: float, k: int, C: int, eps: float):
    """Small-input fast path: whole slab resident, stats + normalize in one pass."""
    inv_m = 1.0 / m_true

    def kernel(x_ref, gamma_ref, beta_ref, o_ref):
        x = x_ref[...].astype(jnp.float32)                 # (rows, W)
        s_c = _combine_k(jnp.sum(x, axis=0, keepdims=True), k, C)
        mean_c = s_c * inv_m                               # (1, C)
        mean_w = _tile_k(mean_c, k)                        # (1, W)
        d = x - mean_w
        q_c = _combine_k(jnp.sum(d * d, axis=0, keepdims=True), k, C)
        var_c = q_c * inv_m                                # biased variance
        inv_std = jax.lax.rsqrt(var_c + eps)
        scale_c = gamma_ref[...].astype(jnp.float32) * inv_std
        shift_c = beta_ref[...].astype(jnp.float32) - mean_c * scale_c
        scale_w = _tile_k(scale_c, k)
        shift_w = _tile_k(shift_c, k)
        o_ref[...] = (x * scale_w + shift_w).astype(o_ref.dtype)

    return kernel


def _make_tile_stats_kernel(k: int, C: int, rows: int, tm: int):
    """Pass 1: per-tile per-channel sum and *centered* sum-of-squares.

    No cross-tile accumulator -> every grid step is independent ("parallel",
    shards across v7x's 2 TensorCores).  Centering about the tile's own mean
    avoids E[x^2]-E[x]^2 cancellation; the exact merge happens in plain JAX.
    """
    ragged = (rows % tm) != 0

    def kernel(x_ref, sum_ref, sq_ref):
        i = pl.program_id(0)
        x = x_ref[...].astype(jnp.float32)                 # (tm, W)
        tm_, w = x.shape

        if ragged:
            remaining = rows - i * tm_
            row_idx = jax.lax.broadcasted_iota(jnp.int32, (tm_, w), 0)
            mask = row_idx < remaining
            x = jnp.where(mask, x, 0.0)
            valid = jnp.minimum(tm_, remaining).astype(jnp.float32)
        else:
            valid = float(tm_)

        s_c = _combine_k(jnp.sum(x, axis=0, keepdims=True), k, C)   # (1, C)
        inv_n = 1.0 / (valid * k)
        mu_w = _tile_k(s_c * inv_n, k)                              # (1, W)
        d = x - mu_w
        if ragged:
            d = jnp.where(mask, d, 0.0)
        q_c = _combine_k(jnp.sum(d * d, axis=0, keepdims=True), k, C)

        sum_ref[...] = s_c.reshape(1, 1, C)
        sq_ref[...] = q_c.reshape(1, 1, C)

    return kernel


def _normalize_kernel(x_ref, scale_ref, shift_ref, o_ref):
    """Pass 2: y = x * scale + shift (per-channel scale/shift precomputed)."""
    x = x_ref[...].astype(jnp.float32)
    o_ref[...] = (x * scale_ref[...] + shift_ref[...]).astype(o_ref.dtype)


# --------------------------------------------------------------------------- #
# Wrapper
# --------------------------------------------------------------------------- #
def transposed_batch_norm_1d(x, gamma, beta, *, eps: float = 1e-5,
                             tile_rows=None, fast_path_bytes: int = 4 << 20):
    """x: (T, N, C). gamma, beta: (C,). Returns (T, N, C) normalized output."""
    T, N, C = x.shape
    M = T * N

    # Lane-dense working layout (rows, W): fold k rows into lanes, no padding.
    k = _fold_factor(M, C)
    W = k * C
    rows = M // k
    xw = x.reshape(rows, W)            # contiguous -> free reshape, no HBM copy

    gamma2d = gamma.reshape(1, C).astype(jnp.float32)
    beta2d = beta.reshape(1, C).astype(jnp.float32)

    vmem_limit = 40 << 20

    # ---- Small-input fast path: whole slab resident, single HBM read+write ----
    if M * C * 4 <= fast_path_bytes:
        out_w = pl.pallas_call(
            _make_fused_kernel(float(M), k, C, eps),
            out_shape=jax.ShapeDtypeStruct((rows, W), x.dtype),
            grid=(1,),
            in_specs=[
                pl.BlockSpec((rows, W), lambda i: (0, 0)),
                pl.BlockSpec((1, C), lambda i: (0, 0)),
                pl.BlockSpec((1, C), lambda i: (0, 0)),
            ],
            out_specs=pl.BlockSpec((rows, W), lambda i: (0, 0)),
            compiler_params=pltpu.CompilerParams(
                dimension_semantics=("arbitrary",),
                vmem_limit_bytes=vmem_limit),
        )(xw, gamma2d, beta2d)
        return out_w.reshape(T, N, C)

    # ---- Tiled two-pass path ----
    sub = _sublane_multiple(x.dtype)
    budget = 4 << 20                   # ~4 MiB (f32-equiv) per pipeline buffer
    cparams = pltpu.CompilerParams(dimension_semantics=("parallel",),
                                   vmem_limit_bytes=vmem_limit)

    # Pass 1: per-tile per-channel (sum, centered sumsq), fully parallel grid.
    tm1 = _pick_tm(rows, W, sub, budget, tile_rows)
    n1 = -(-rows // tm1)
    tile_sum, tile_sq = pl.pallas_call(
        _make_tile_stats_kernel(k, C, rows, tm1),
        out_shape=(jax.ShapeDtypeStruct((n1, 1, C), jnp.float32),
                   jax.ShapeDtypeStruct((n1, 1, C), jnp.float32)),
        grid=(n1,),
        in_specs=[pl.BlockSpec((tm1, W), lambda i: (i, 0))],
        out_specs=(pl.BlockSpec((1, 1, C), lambda i: (i, 0, 0)),
                   pl.BlockSpec((1, 1, C), lambda i: (i, 0, 0))),
        compiler_params=cparams,
    )(xw)

    # Tiny JAX-side merge (Chan's parallel variance) -> per-channel scale/shift.
    counts = np.full((n1, 1), float(tm1 * k), dtype=np.float32)
    counts[-1, 0] = float((rows - (n1 - 1) * tm1) * k)
    counts = jnp.asarray(counts)                          # (n1, 1)
    s = tile_sum[:, 0, :]                                 # (n1, C)
    q = tile_sq[:, 0, :]                                  # (n1, C)
    mean = jnp.sum(s, axis=0, keepdims=True) / M          # (1, C)
    mu_i = s / counts
    m2 = (jnp.sum(q, axis=0, keepdims=True)
          + jnp.sum(counts * (mu_i - mean) ** 2, axis=0, keepdims=True))
    var = m2 / M                                          # biased variance
    inv_std = jax.lax.rsqrt(var + eps)
    scale = gamma2d * inv_std                             # (1, C)
    shift = beta2d - mean * scale
    scale_w = jnp.tile(scale, (1, k))                     # (1, W)
    shift_w = jnp.tile(shift, (1, k))

    # Pass 2: streaming normalize, independent tiles ("parallel").
    tm2 = _pick_tm(rows, W, sub, budget, tile_rows)
    n2 = -(-rows // tm2)
    out_w = pl.pallas_call(
        _normalize_kernel,
        out_shape=jax.ShapeDtypeStruct((rows, W), x.dtype),
        grid=(n2,),
        in_specs=[
            pl.BlockSpec((tm2, W), lambda i: (i, 0)),
            pl.BlockSpec((1, W), lambda i: (0, 0)),
            pl.BlockSpec((1, W), lambda i: (0, 0)),
        ],
        out_specs=pl.BlockSpec((tm2, W), lambda i: (i, 0)),
        compiler_params=cparams,
    )(xw, scale_w, shift_w)

    return out_w.reshape(T, N, C)


# --------------------------------------------------------------------------- #
# Reference & self-test
# --------------------------------------------------------------------------- #
def _reference(x, gamma, beta, eps=1e-5):
    T, N, C = x.shape
    xf = x.astype(jnp.float32).reshape(T * N, C)
    mean = jnp.mean(xf, axis=0, keepdims=True)
    var = jnp.mean((xf - mean) ** 2, axis=0, keepdims=True)
    y = gamma * (xf - mean) / jnp.sqrt(var + eps) + beta
    return y.reshape(T, N, C).astype(x.dtype)


if __name__ == "__main__":
    key = jax.random.PRNGKey(0)
    k1, k2 = jax.random.split(key)

    # Case 1: small (T, N, C) — exercises the single-pass resident fast path.
    T, N, C = 8, 2, 32
    x = jax.random.normal(k1, (T, N, C), dtype=jnp.float32) * 2.0 + 3.0
    gamma = jnp.linspace(0.5, 1.5, C, dtype=jnp.float32)
    beta = jnp.linspace(-0.25, 0.25, C, dtype=jnp.float32)
    out = jax.block_until_ready(transposed_batch_norm_1d(x, gamma, beta))
    ref = _reference(x, gamma, beta)
    assert out.shape == (T, N, C)
    assert jnp.allclose(out, ref, atol=1e-4, rtol=1e-4)

    # Case 2: force the tiled two-pass path with a ragged last tile
    # (rows = 22, tile = 8 -> 3 tiles, last one masked).
    T2, N2, C2 = 66, 2, 24
    x2 = jax.random.normal(k2, (T2, N2, C2), dtype=jnp.float32) + 1.0
    g2 = jnp.linspace(0.75, 1.25, C2, dtype=jnp.float32)
    b2 = jnp.linspace(-0.1, 0.1, C2, dtype=jnp.float32)
    out2 = jax.block_until_ready(
        transposed_batch_norm_1d(x2, g2, b2, tile_rows=8, fast_path_bytes=0))
    ref2 = _reference(x2, g2, b2)
    assert out2.shape == (T2, N2, C2)
    assert jnp.allclose(out2, ref2, atol=1e-4, rtol=1e-4)

    print("KERNEL_OK")
</pallas_src>

<mosaic_0001>
module attributes {stable_mosaic.version = 11 : i64} {
  func.func @kernel(%arg0: i32, %arg1: memref<4x128xf32, #tpu.memory_space<vmem>>, %arg2: memref<1x32xf32, #tpu.memory_space<vmem>>, %arg3: memref<1x32xf32, #tpu.memory_space<vmem>>, %arg4: memref<4x128xf32, #tpu.memory_space<vmem>>) attributes {dimension_semantics = [#tpu.dimension_semantics<arbitrary>], iteration_bounds = array<i64: 1>, scalar_prefetch = 0 : i64, scratch_operands = 0 : i64, tpu.core_type = #tpu.core_type<tc>, window_params = [{pipeline_mode = #tpu.pipeline_mode<synchronous>, transform_indices = @transform_0, window_bounds = array<i64: 4, 128>}, {pipeline_mode = #tpu.pipeline_mode<synchronous>, transform_indices = @transform_1, window_bounds = array<i64: 1, 32>}, {pipeline_mode = #tpu.pipeline_mode<synchronous>, transform_indices = @transform_2, window_bounds = array<i64: 1, 32>}, {pipeline_mode = #tpu.pipeline_mode<synchronous>, transform_indices = @transform_3, window_bounds = array<i64: 4, 128>}]} {
    %c0 = arith.constant 0 : index
    %c0_0 = arith.constant 0 : index
    %0 = vector.load %arg1[%c0, %c0_0] : memref<4x128xf32, #tpu.memory_space<vmem>>, vector<4x128xf32>
    %cst = arith.constant dense<0.000000e+00> : vector<128xf32>
    %1 = vector.multi_reduction <add>, %0, %cst [0] : vector<4x128xf32> to vector<128xf32>
    %2 = vector.shape_cast %1 : vector<128xf32> to vector<1x128xf32>
    %3 = vector.extract_strided_slice %2 {offsets = [0, 0], sizes = [1, 32], strides = [1, 1]} : vector<1x128xf32> to vector<1x32xf32>
    %4 = vector.extract_strided_slice %2 {offsets = [0, 32], sizes = [1, 32], strides = [1, 1]} : vector<1x128xf32> to vector<1x32xf32>
    %5 = arith.addf %3, %4 : vector<1x32xf32>
    %6 = vector.extract_strided_slice %2 {offsets = [0, 64], sizes = [1, 32], strides = [1, 1]} : vector<1x128xf32> to vector<1x32xf32>
    %7 = arith.addf %5, %6 : vector<1x32xf32>
    %8 = vector.extract_strided_slice %2 {offsets = [0, 96], sizes = [1, 32], strides = [1, 1]} : vector<1x128xf32> to vector<1x32xf32>
    %9 = arith.addf %7, %8 : vector<1x32xf32>
    %cst_1 = arith.constant 6.250000e-02 : f32
    %10 = vector.broadcast %cst_1 : f32 to vector<1x32xf32>
    %11 = arith.mulf %9, %10 : vector<1x32xf32>
    %12 = tpu.concatenate %11, %11, %11, %11 in 1 : vector<1x32xf32>, vector<1x32xf32>, vector<1x32xf32>, vector<1x32xf32> -> vector<1x128xf32>
    %13 = vector.broadcast %12 : vector<1x128xf32> to vector<4x128xf32>
    %14 = arith.subf %0, %13 : vector<4x128xf32>
    %15 = arith.mulf %14, %14 : vector<4x128xf32>
    %cst_2 = arith.constant dense<0.000000e+00> : vector<128xf32>
    %16 = vector.multi_reduction <add>, %15, %cst_2 [0] : vector<4x128xf32> to vector<128xf32>
    %17 = vector.shape_cast %16 : vector<128xf32> to vector<1x128xf32>
    %18 = vector.extract_strided_slice %17 {offsets = [0, 0], sizes = [1, 32], strides = [1, 1]} : vector<1x128xf32> to vector<1x32xf32>
    %19 = vector.extract_strided_slice %17 {offsets = [0, 32], sizes = [1, 32], strides = [1, 1]} : vector<1x128xf32> to vector<1x32xf32>
    %20 = arith.addf %18, %19 : vector<1x32xf32>
    %21 = vector.extract_strided_slice %17 {offsets = [0, 64], sizes = [1, 32], strides = [1, 1]} : vector<1x128xf32> to vector<1x32xf32>
    %22 = arith.addf %20, %21 : vector<1x32xf32>
    %23 = vector.extract_strided_slice %17 {offsets = [0, 96], sizes = [1, 32], strides = [1, 1]} : vector<1x128xf32> to vector<1x32xf32>
    %24 = arith.addf %22, %23 : vector<1x32xf32>
    %cst_3 = arith.constant 6.250000e-02 : f32
    %25 = vector.broadcast %cst_3 : f32 to vector<1x32xf32>
    %26 = arith.mulf %24, %25 : vector<1x32xf32>
    %cst_4 = arith.constant 9.99999974E-6 : f32
    %27 = vector.broadcast %cst_4 : f32 to vector<1x32xf32>
    %28 = arith.addf %26, %27 : vector<1x32xf32>
    %29 = math.rsqrt %28 : vector<1x32xf32>
    %c0_5 = arith.constant 0 : index
    %c0_6 = arith.constant 0 : index
    %30 = vector.load %arg2[%c0_5, %c0_6] : memref<1x32xf32, #tpu.memory_space<vmem>>, vector<1x32xf32>
    %31 = arith.mulf %30, %29 : vector<1x32xf32>
    %c0_7 = arith.constant 0 : index
    %c0_8 = arith.constant 0 : index
    %32 = vector.load %arg3[%c0_7, %c0_8] : memref<1x32xf32, #tpu.memory_space<vmem>>, vector<1x32xf32>
    %33 = arith.mulf %11, %31 : vector<1x32xf32>
    %34 = arith.subf %32, %33 : vector<1x32xf32>
    %35 = tpu.concatenate %31, %31, %31, %31 in 1 : vector<1x32xf32>, vector<1x32xf32>, vector<1x32xf32>, vector<1x32xf32> -> vector<1x128xf32>
    %36 = tpu.concatenate %34, %34, %34, %34 in 1 : vector<1x32xf32>, vector<1x32xf32>, vector<1x32xf32>, vector<1x32xf32> -> vector<1x128xf32>
    %37 = vector.broadcast %35 : vector<1x128xf32> to vector<4x128xf32>
    %38 = arith.mulf %0, %37 : vector<4x128xf32>
    %39 = vector.broadcast %36 : vector<1x128xf32> to vector<4x128xf32>
    %40 = arith.addf %38, %39 : vector<4x128xf32>
    %c0_9 = arith.constant 0 : index
    %c0_10 = arith.constant 0 : index
    %41 = vector.load %arg4[%c0_9, %c0_10] : memref<4x128xf32, #tpu.memory_space<vmem>>, vector<4x128xf32>
    tpu.vector_store %arg4[%c0_9, %c0_10], %40 {strides = array<i32>} : memref<4x128xf32, #tpu.memory_space<vmem>>, vector<4x128xf32>,
    return
  }
  func.func @transform_0(%arg0: i32) -> (i32, i32) {
    %c0_i32 = arith.constant 0 : i32
    %c0_i32_0 = arith.constant 0 : i32
    %c0_i32_1 = arith.constant 0 : i32
    return %c0_i32, %c0_i32_0 : i32, i32
  }
  func.func @transform_1(%arg0: i32) -> (i32, i32) {
    %c0_i32 = arith.constant 0 : i32
    %c0_i32_0 = arith.constant 0 : i32
    %c0_i32_1 = arith.constant 0 : i32
    return %c0_i32, %c0_i32_0 : i32, i32
  }
  func.func @transform_2(%arg0: i32) -> (i32, i32) {
    %c0_i32 = arith.constant 0 : i32
    %c0_i32_0 = arith.constant 0 : i32
    %c0_i32_1 = arith.constant 0 : i32
    return %c0_i32, %c0_i32_0 : i32, i32
  }
  func.func @transform_3(%arg0: i32) -> (i32, i32) {
    %c0_i32 = arith.constant 0 : i32
    %c0_i32_0 = arith.constant 0 : i32
    %c0_i32_1 = arith.constant 0 : i32
    return %c0_i32, %c0_i32_0 : i32, i32
  }
}

</mosaic_0001>

<llo_original>
// kernel: tpu_custom_call.1
$region0: #{tpu_custom_call.1}
  #allocation0 [shape = 'u32[]', space=smem, size = 0x4, offset = 0x4, fixed_abs, tag = 'smem constant byte address 0x4 - core index']
  #allocation1 [shape = 'u32[144,128]{1,0:T(1,128)}', space=vmem, size = 0x12000, scoped, tag = 'internal scratch']
  %s0 = inlined_call_operand.hbm [shape: f32[4,128], index: 0, kind: input, shape index: {}]
  %s1 = inlined_call_operand.vmem [shape: f32[1,32], index: 1, kind: input, shape index: {}]
  %s2 = inlined_call_operand.vmem [shape: f32[1,32], index: 2, kind: input, shape index: {}]
  %s3 = inlined_call_operand.hbm [shape: f32[4,128], index: 3, kind: output, shape index: {}]
  %s4 = sld [smem:[#allocation0]]
  $region26: #{tpu_custom_call.1} parent=0
    _
  %s6 = ssub.s32 1, %s4
  %s7 = scalar_select 0, %s6, %s4
  $region1: #{tpu_custom_call.1} parent=0
    #allocation2 [shape = 'u8[2048]{0}', space=vmem, size = 0x800, scoped, tag = 'input window, operand 0, single buffered']
    #allocation3 [shape = 's32[1]{0}', space=sflag, size = 0x4, scoped, tag = 'scoped memory for tpu_custom_call.1']
    #allocation4 [shape = 's32[1]{0}', space=sflag, size = 0x4, scoped, tag = 'scoped memory for tpu_custom_call.1']
    #allocation5 [shape = 'u8[2048]{0}', space=vmem, size = 0x800, scoped, tag = 'output window, operand 0, single buffered']
    %8 = vsyncpa [#allocation3], 0
    %9 = vsyncpa [#allocation4], 0
    // Predicated region
    $region2: #{tpu_custom_call.1} parent=1 // pred_check
      _
    $region3: #{tpu_custom_call.1} parent=1 // pred_check_branch
      %11 = sbr.rel (0) target = $region5
    $region4: #{tpu_custom_call.1} parent=1 // pred_region
      %s13 = ssub.s32 64, 64
      %14 = vsyncadd [#allocation3], %s13
      %s16 = sshll.u32 [#allocation2], 4
      %s17 = int_to_ptr.vmem [resolvable:$true] %s16
      %19 = dma.hbm_to_vmem [thread:$0]  %s0, 64, %s17, [#allocation3]
    $region5: #{tpu_custom_call.1} parent=1 // pred_fallthru
      _
    // Predicated region
    $region6: #{tpu_custom_call.1} parent=1 // pred_check
      _
    $region7: #{tpu_custom_call.1} parent=1 // pred_check_branch
      %21 = sbr.rel (0) target = $region9
    $region8: #{tpu_custom_call.1} parent=1 // pred_region
      _
    $region9: #{tpu_custom_call.1} parent=1 // pred_fallthru
      _
    // Predicated region
    $region10: #{tpu_custom_call.1} parent=1 // pred_check
      _
    $region11: #{tpu_custom_call.1} parent=1 // pred_check_branch
      %23 = sbr.rel (0) target = $region13
    $region12: #{tpu_custom_call.1} parent=1 // pred_region
      _
    $region13: #{tpu_custom_call.1} parent=1 // pred_fallthru
      _
    // Predicated region
    $region14: #{tpu_custom_call.1} parent=1 // pred_check
      _
    $region15: #{tpu_custom_call.1} parent=1 // pred_check_branch
      %25 = sbr.rel (0) target = $region17
    $region16: #{tpu_custom_call.1} parent=1 // pred_region
      %26 = dma.done [#allocation3], 64
    $region17: #{tpu_custom_call.1} parent=1 // pred_fallthru
      _
    %v27 = vld [vmem:[#allocation2] sm:$0xf]
    %vm28 = vcmask 1043456
    %v29 = vsel %vm28, %v27, 0.0
    %v30 = vrot.slane %v29, 4
    %v31 = vadd.f32 %v29, %v30
    %v32 = vrot.slane %v31, 2
    %v33 = vadd.f32 %v31, %v32
    %v34 = vrot.slane %v33, 1
    %v35 = vadd.f32 %v33, %v34
    %37 = vrot.lane.b32.xlu0 %v35, 96
    %v38 = vpop.permute.xlu0 %37
    %v40 = vadd.f32 %v35, %v38
    %41 = vrot.lane.b32.xlu0 %v35, 64
    %v42 = vpop.permute.xlu0 %41
    %v44 = vadd.f32 %v40, %v42
    %45 = vrot.lane.b32.xlu0 %v35, 32
    %v46 = vpop.permute.xlu0 %45
    %v48 = vadd.f32 %v44, %v46
    %v49 = vmul.f32 %v48, 0.0625
    %51 = vrot.lane.b32.xlu0 %v49, 32
    %v52 = vpop.permute.xlu0 %51
    %54 = vrot.lane.b32.xlu0 %v49, 64
    %v55 = vpop.permute.xlu0 %54
    %57 = vrot.lane.b32.xlu0 %v49, 96
    %v58 = vpop.permute.xlu0 %57
    %vm60 = vcmask 261120
    %v61 = vsel %vm60, %v49, %v52
    %vm62 = vcmask 523264
    %v63 = vsel %vm62, %v61, %v55
    %vm64 = vcmask 785408
    %v65 = vsel %vm64, %v63, %v58
    %v66 = vlaneseq
    %v67 = vshrl.u32 %v66, 7
    %v68 = vsub.s32 0, %v67
    %v69 = vrot.slane %v65, %v68
    %v70 = vsub.f32 %v27, %v69
    %v71 = vmul.f32 %v70, %v70
    %v72 = vsel %vm28, %v71, 0.0
    %v73 = vrot.slane %v72, 4
    %v74 = vadd.f32 %v72, %v73
    %v75 = vrot.slane %v74, 2
    %v76 = vadd.f32 %v74, %v75
    %v77 = vrot.slane %v76, 1
    %v78 = vadd.f32 %v76, %v77
    %80 = vrot.lane.b32.xlu0 %v78, 96
    %v81 = vpop.permute.xlu0 %80
    %v83 = vadd.f32 %v78, %v81
    %84 = vrot.lane.b32.xlu0 %v78, 64
    %v85 = vpop.permute.xlu0 %84
    %v87 = vadd.f32 %v83, %v85
    %88 = vrot.lane.b32.xlu0 %v78, 32
    %v89 = vpop.permute.xlu0 %88
    %v91 = vadd.f32 %v87, %v89
    %v92 = vmul.f32 %v91, 0.0625
    %v93 = vadd.f32 %v92, 1e-05
    %v94 = vrsqrt.pop %v93
    %v95 = vld [vmem:[%s1] sm:$0x1]
    %v96 = vmul.f32 %v95, %v94
    %v97 = vld [vmem:[%s2] sm:$0x1]
    %v98 = vmul.f32 %v49, %v96
    %v99 = vsub.f32 %v97, %v98
    %v101 = vlaneseq
    %v102 = vshrl.u32 %v101, 7
    %v103 = vsub.s32 0, %v102
    %v104 = vrot.slane %v96, %v103
    %105 = vrot.lane.b32.xlu0 %v104, 32
    %v106 = vpop.permute.xlu0 %105
    %108 = vrot.lane.b32.xlu0 %v104, 64
    %v109 = vpop.permute.xlu0 %108
    %111 = vrot.lane.b32.xlu0 %v104, 96
    %v112 = vpop.permute.xlu0 %111
    %v114 = vsel %vm60, %v96, %v106
    %v115 = vsel %vm62, %v114, %v109
    %v116 = vsel %vm64, %v115, %v112
    %v118 = vlaneseq
    %v119 = vshrl.u32 %v118, 7
    %v120 = vsub.s32 0, %v119
    %v121 = vrot.slane %v99, %v120
    %122 = vrot.lane.b32.xlu0 %v121, 32
    %v123 = vpop.permute.xlu0 %122
    %125 = vrot.lane.b32.xlu0 %v121, 64
    %v126 = vpop.permute.xlu0 %125
    %128 = vrot.lane.b32.xlu0 %v121, 96
    %v129 = vpop.permute.xlu0 %128
    %v131 = vsel %vm60, %v99, %v123
    %v132 = vsel %vm62, %v131, %v126
    %v133 = vsel %vm64, %v132, %v129
    %v134 = vlaneseq
    %v135 = vshrl.u32 %v134, 7
    %v136 = vsub.s32 0, %v135
    %v137 = vrot.slane %v116, %v136
    %v138 = vmul.f32 %v27, %v137
    %v139 = vlaneseq
    %v140 = vshrl.u32 %v139, 7
    %v141 = vsub.s32 0, %v140
    %v142 = vrot.slane %v133, %v141
    %v143 = vadd.f32 %v138, %v142
    %144 = vst [vmem:[#allocation5] sm:$0xf] %v143
    // Predicated region
    $region18: #{tpu_custom_call.1} parent=1 // pred_check
      _
    $region19: #{tpu_custom_call.1} parent=1 // pred_check_branch
      %146 = sbr.rel (0) target = $region21
    $region20: #{tpu_custom_call.1} parent=1 // pred_region
      %s148 = ssub.s32 64, 64
      %149 = vsyncadd [#allocation4], %s148
      %s151 = sshll.u32 [#allocation5], 4
      %s152 = int_to_ptr.vmem [resolvable:$true] %s151
      %154 = dma.vmem_to_hbm [thread:$0]  %s152, 64, %s3, [#allocation4]
    $region21: #{tpu_custom_call.1} parent=1 // pred_fallthru
      _
    // Predicated region
    $region22: #{tpu_custom_call.1} parent=1 // pred_check
      _
    $region23: #{tpu_custom_call.1} parent=1 // pred_check_branch
      %156 = sbr.rel (0) target = $region25
    $region24: #{tpu_custom_call.1} parent=1 // pred_region
      %157 = dma.done [#allocation4], 64
    $region25: #{tpu_custom_call.1} parent=1 // pred_fallthru
      _
    %158 = vsyncpa [#allocation3], 1
    %159 = vsyncpa [#allocation4], 1

</llo_original>
